<compile_context>
chip_gen: v7x
topology: tpu7x:2x2x1
jax: 0.10.0
libtpu: 0.0.40
codegen_flags: <defaults>
</compile_context>

<pallas_src>
import functools

import jax
import jax.numpy as jnp
import numpy as np
from jax import lax
from jax.experimental import pallas as pl
from jax.experimental.pallas import tpu as pltpu


def _tile_rows(a, reps):
    """Tile a (N, D) slab `reps` times along the sublane (row) axis."""
    return a if reps == 1 else jnp.concatenate([a] * reps, axis=0)


def pct_kernel(B, N, x_ref, wf_ref, bf_ref, gamma_ref, beta_ref, pool_ref,
               out_ref):
    C = out_ref.shape[-1]
    Cq = wf_ref.shape[-1] - 3 * C

    # ---- fused projection: one MXU push gives [lin | lin@Wt | q | v@Wt] ----
    x2d = x_ref[...]                                                    # (B*N, 11)
    A = jnp.dot(x2d, wf_ref[...], preferred_element_type=jnp.float32) + bf_ref[...]
    lin = A[:, :C]                                                      # (B*N, C)
    lin_t = A[:, C:2 * C]                                               # (B*N, C)  = lin@Wt + bt
    q = A[:, 2 * C:2 * C + Cq]                                          # (B*N, C//4)
    vt = A[:, 2 * C + Cq:]                                              # (B*N, C)  = v@Wt

    # ---- attention over the batch axis (torch.bmm with batch dim = N) ----
    # energy[i*N+n, j] = <q_i[n, :], q_j[n, :]>   (q and k share the weight)
    cols = []
    for j in range(B):
        qj = _tile_rows(q[j * N:(j + 1) * N, :], B)                     # (B*N, Cq)
        cols.append(jnp.sum(q * qj, axis=-1, keepdims=True))            # (B*N, 1)
    energy = jnp.concatenate(cols, axis=-1) if B > 1 else cols[0]       # (B*N, B)

    # softmax over j (reciprocal goes to the otherwise idle EUP slot)
    m = jnp.max(energy, axis=-1, keepdims=True)
    p = jnp.exp(energy - m)
    s = jnp.sum(p, axis=-1, keepdims=True)
    att = p * pl.reciprocal(s, approx=True)                             # (B*N, B)

    # attention / (1e-9 + attention.sum(dim=1, keepdims=True))  -> sum over i
    denom = att[0:N, :]
    for i in range(1, B):
        denom = denom + att[i * N:(i + 1) * N, :]
    inv_denom = pl.reciprocal(denom + 1e-9, approx=True)                # (N, B)
    w = att * _tile_rows(inv_denom, B)                                  # (B*N, B)

    # x_r_t[i*N+n, :] = sum_j w[i*N+n, j] * (v@Wt)_j[n, :]   (trans_conv folded)
    x_r_t = jnp.zeros_like(lin)
    for j in range(B):
        vtj = _tile_rows(vt[j * N:(j + 1) * N, :], B)                   # (B*N, C)
        x_r_t = x_r_t + w[:, j:j + 1] * vtj

    t = lin_t - x_r_t                                                   # trans_conv output

    # ---- BatchNorm1d (training-mode stats over B*N rows, centered form) ----
    inv_cnt = 1.0 / float(B * N)
    mean = jnp.sum(t, axis=0, keepdims=True) * inv_cnt                  # (1, C)
    d = t - mean
    var = jnp.sum(d * d, axis=0, keepdims=True) * inv_cnt
    y = d * lax.rsqrt(var + 1e-5) * gamma_ref[...] + beta_ref[...]
    y = jnp.maximum(y, 0.0)

    # ---- residual add + adaptive avg pool over N (one small MXU matmul) ----
    xo = lin + y                                                        # (B*N, C)
    out_ref[...] = jnp.dot(pool_ref[...], xo,
                           preferred_element_type=jnp.float32)          # (B, C)


def pct_forward_grouped(xg, params):
    """xg: (G, B, N, 11) -> (G, B, C).  Each group is one independent PCT forward."""
    G, B, N, F = xg.shape
    C = params["linear_w"].shape[0]
    Cq = params["qk_w"].shape[0]
    f32 = jnp.float32

    Wl = params["linear_w"].T.astype(f32)                 # (11, C)
    bl = params["linear_b"].reshape(1, C).astype(f32)
    Wqk = params["qk_w"].T.astype(f32)                    # (C, C//4)
    Wv = params["v_w"].T.astype(f32)                      # (C, C)
    bv = params["v_b"].reshape(1, C).astype(f32)
    Wt = params["trans_w"].T.astype(f32)                  # (C, C)
    bt = params["trans_b"].reshape(1, C).astype(f32)
    gamma = params["bn_gamma"].reshape(1, C).astype(f32)
    beta = params["bn_beta"].reshape(1, C).astype(f32)

    # Host-side fusion: [lin | lin@Wt + bt | q | v@Wt]  (trans_conv folded in).
    Wf = jnp.concatenate([Wl, Wl @ Wt, Wl @ Wqk, Wl @ Wv @ Wt], axis=1)  # (11, 3C+Cq)
    bf = jnp.concatenate([bl, bl @ Wt + bt, bl @ Wqk,
                          (bl @ Wv + bv) @ Wt], axis=1)                  # (1, 3C+Cq)

    # Pooling matrix for the adaptive avg-pool: (B, B*N), rows average blocks of N.
    pool = jnp.repeat(jnp.eye(B, dtype=f32), N, axis=1) * (1.0 / float(N))

    x2d = xg.reshape(G, B * N, F).astype(f32)

    def wspec(a):
        nd = a.ndim
        return pl.BlockSpec(a.shape, lambda g, _nd=nd: (0,) * _nd)      # VMEM-resident

    flops = 2 * G * B * N * (F * (3 * C + Cq) + B * Cq + 2 * B * C) + 2 * G * B * B * N * C
    bytes_accessed = 4 * (x2d.size + Wf.size + bf.size + gamma.size + beta.size
                          + pool.size + G * B * C)

    out = pl.pallas_call(
        functools.partial(pct_kernel, B, N),
        out_shape=jax.ShapeDtypeStruct((G, B, C), f32),
        grid=(G,),
        in_specs=[
            pl.BlockSpec((None, B * N, F), lambda g: (g, 0, 0)),        # per-group x
            wspec(Wf), wspec(bf), wspec(gamma), wspec(beta), wspec(pool),
        ],
        out_specs=pl.BlockSpec((None, B, C), lambda g: (g, 0, 0)),
        compiler_params=pltpu.CompilerParams(
            dimension_semantics=("parallel",),      # v7x: groups split across TCs
        ),
        cost_estimate=pl.CostEstimate(
            flops=flops,
            transcendentals=G * B * N * (B + 2),
            bytes_accessed=bytes_accessed),
    )(x2d, Wf, bf, gamma, beta, pool)
    return out                                                           # (G, B, C)


def pct_forward(x, params):
    """x: (B, N, 11) -> (B, C, 1), matching PCT.forward of a fresh .train() module."""
    B, N, _ = x.shape
    C = params["linear_w"].shape[0]
    out = pct_forward_grouped(x[None], params)                           # (1, B, C)
    return out.reshape(B, C, 1)


def pct_reference(x, params):
    """Pure-JAX mirror of the PyTorch forward (training-mode BatchNorm)."""
    lin = jnp.einsum("bnf,cf->bnc", x, params["linear_w"]) + params["linear_b"]
    xc = jnp.transpose(lin, (0, 2, 1))                                   # (B, C, N)
    q = jnp.einsum("bcn,dc->bdn", xc, params["qk_w"])
    k = q                                                                # shared weight
    v = jnp.einsum("bcn,dc->bdn", xc, params["v_w"]) + params["v_b"][None, :, None]
    x_q = jnp.transpose(q, (2, 0, 1))                                    # (N, B, C//4)
    x_k = jnp.transpose(k, (2, 1, 0))                                    # (N, C//4, B)
    x_v = jnp.transpose(v, (2, 0, 1))                                    # (N, B, C)
    energy = jnp.einsum("nbc,ncd->nbd", x_q, x_k)
    attention = jax.nn.softmax(energy, axis=-1)
    attention = attention / (1e-9 + attention.sum(axis=1, keepdims=True))
    x_r = jnp.einsum("nij,njc->nic", attention, x_v)
    x_r = jnp.transpose(x_r, (1, 2, 0))                                  # (B, C, N)
    d = xc - x_r
    t = jnp.einsum("bcn,dc->bdn", d, params["trans_w"]) + params["trans_b"][None, :, None]
    mean = t.mean(axis=(0, 2), keepdims=True)
    var = ((t - mean) ** 2).mean(axis=(0, 2), keepdims=True)
    y = (t - mean) / jnp.sqrt(var + 1e-5)
    y = y * params["bn_gamma"][None, :, None] + params["bn_beta"][None, :, None]
    y = jnp.maximum(y, 0.0)
    out = xc + y
    return out.mean(axis=-1, keepdims=True)                              # (B, C, 1)


if __name__ == "__main__":
    B, N, C = 2, 16, 32                      # channels=32, points per pillar N=16
    key = jax.random.PRNGKey(0)
    ks = jax.random.split(key, 9)

    params = {
        "linear_w": 0.1 * jax.random.normal(ks[0], (C, 11), jnp.float32),
        "linear_b": 0.1 * jax.random.normal(ks[1], (C,), jnp.float32),
        "qk_w":     0.1 * jax.random.normal(ks[2], (C // 4, C), jnp.float32),
        "v_w":      0.1 * jax.random.normal(ks[3], (C, C), jnp.float32),
        "v_b":      0.1 * jax.random.normal(ks[4], (C,), jnp.float32),
        "trans_w":  0.1 * jax.random.normal(ks[5], (C, C), jnp.float32),
        "trans_b":  0.1 * jax.random.normal(ks[6], (C,), jnp.float32),
        "bn_gamma": jnp.ones((C,), jnp.float32),
        "bn_beta":  jnp.zeros((C,), jnp.float32),
    }
    x = jax.random.normal(ks[7], (B, N, 11), jnp.float32)

    # Single-forward path (matches the PyTorch module exactly).
    out = jax.block_until_ready(pct_forward(x, params))
    ref = jax.block_until_ready(pct_reference(x, params))
    assert out.shape == (B, C, 1), out.shape
    np.testing.assert_allclose(np.asarray(out), np.asarray(ref), rtol=5e-2, atol=5e-3)

    # Grouped path: G independent PCT forwards in one pallas_call (grid=(G,),
    # "parallel" so v7x splits groups across its two TensorCores).
    G = 4
    xg = jax.random.normal(ks[8], (G, B, N, 11), jnp.float32)
    outg = jax.block_until_ready(pct_forward_grouped(xg, params))
    refg = jax.vmap(lambda xx: pct_reference(xx, params))(xg)[..., 0]    # (G, B, C)
    np.testing.assert_allclose(np.asarray(outg), np.asarray(refg), rtol=5e-2, atol=5e-3)

    print("KERNEL_OK")
</pallas_src>

<mosaic_0001>
module attributes {stable_mosaic.version = 11 : i64} {
  func.func @pct_kernel(%arg0: i32, %arg1: memref<1x32x11xf32, #tpu.memory_space<vmem>>, %arg2: memref<11x104xf32, #tpu.memory_space<vmem>>, %arg3: memref<1x104xf32, #tpu.memory_space<vmem>>, %arg4: memref<1x32xf32, #tpu.memory_space<vmem>>, %arg5: memref<1x32xf32, #tpu.memory_space<vmem>>, %arg6: memref<2x32xf32, #tpu.memory_space<vmem>>, %arg7: memref<1x2x32xf32, #tpu.memory_space<vmem>>) attributes {dimension_semantics = [#tpu.dimension_semantics<parallel>], iteration_bounds = array<i64: 1>, scalar_prefetch = 0 : i64, scratch_operands = 0 : i64, tpu.core_type = #tpu.core_type<tc>, window_params = [{transform_indices = @transform_0, window_bounds = array<i64: 1, 32, 11>}, {pipeline_mode = #tpu.pipeline_mode<synchronous>, transform_indices = @transform_1, window_bounds = array<i64: 11, 104>}, {pipeline_mode = #tpu.pipeline_mode<synchronous>, transform_indices = @transform_2, window_bounds = array<i64: 1, 104>}, {pipeline_mode = #tpu.pipeline_mode<synchronous>, transform_indices = @transform_3, window_bounds = array<i64: 1, 32>}, {pipeline_mode = #tpu.pipeline_mode<synchronous>, transform_indices = @transform_4, window_bounds = array<i64: 1, 32>}, {pipeline_mode = #tpu.pipeline_mode<synchronous>, transform_indices = @transform_5, window_bounds = array<i64: 2, 32>}, {transform_indices = @transform_6, window_bounds = array<i64: 1, 2, 32>}]} {
    %c0 = arith.constant 0 : index
    %c0_0 = arith.constant 0 : index
    %c0_1 = arith.constant 0 : index
    %0 = vector.load %arg1[%c0, %c0_0, %c0_1] : memref<1x32x11xf32, #tpu.memory_space<vmem>>, vector<1x32x11xf32>
    %1 = vector.shape_cast %0 : vector<1x32x11xf32> to vector<32x11xf32>
    %c0_2 = arith.constant 0 : index
    %c0_3 = arith.constant 0 : index
    %2 = vector.load %arg2[%c0_2, %c0_3] : memref<11x104xf32, #tpu.memory_space<vmem>>, vector<11x104xf32>
    %cst = arith.constant dense<0.000000e+00> : vector<32x104xf32>
    %3 = tpu.matmul %1, %2, %cst {dimension_numbers = #tpu.dot_dimension_numbers<[1], [0], [0], [1], [0, 0, 1, 1], [], []>} : vector<32x11xf32>, vector<11x104xf32>, vector<32x104xf32> -> vector<32x104xf32>
    %c0_4 = arith.constant 0 : index
    %c0_5 = arith.constant 0 : index
    %4 = vector.load %arg3[%c0_4, %c0_5] : memref<1x104xf32, #tpu.memory_space<vmem>>, vector<1x104xf32>
    %5 = vector.broadcast %4 : vector<1x104xf32> to vector<32x104xf32>
    %6 = arith.addf %3, %5 : vector<32x104xf32>
    %7 = vector.extract_strided_slice %6 {offsets = [0, 0], sizes = [32, 32], strides = [1, 1]} : vector<32x104xf32> to vector<32x32xf32>
    %8 = vector.extract_strided_slice %6 {offsets = [0, 32], sizes = [32, 32], strides = [1, 1]} : vector<32x104xf32> to vector<32x32xf32>
    %9 = vector.extract_strided_slice %6 {offsets = [0, 64], sizes = [32, 8], strides = [1, 1]} : vector<32x104xf32> to vector<32x8xf32>
    %10 = vector.extract_strided_slice %6 {offsets = [0, 72], sizes = [32, 32], strides = [1, 1]} : vector<32x104xf32> to vector<32x32xf32>
    %11 = vector.extract_strided_slice %9 {offsets = [0, 0], sizes = [16, 8], strides = [1, 1]} : vector<32x8xf32> to vector<16x8xf32>
    %12 = tpu.concatenate %11, %11 in 0 : vector<16x8xf32>, vector<16x8xf32> -> vector<32x8xf32>
    %13 = arith.mulf %9, %12 : vector<32x8xf32>
    %cst_6 = arith.constant dense<0.000000e+00> : vector<32xf32>
    %14 = vector.multi_reduction <add>, %13, %cst_6 [1] : vector<32x8xf32> to vector<32xf32>
    %15 = vector.shape_cast %14 : vector<32xf32> to vector<32x1xf32>
    %16 = vector.extract_strided_slice %9 {offsets = [16, 0], sizes = [16, 8], strides = [1, 1]} : vector<32x8xf32> to vector<16x8xf32>
    %17 = tpu.concatenate %16, %16 in 0 : vector<16x8xf32>, vector<16x8xf32> -> vector<32x8xf32>
    %18 = arith.mulf %9, %17 : vector<32x8xf32>
    %cst_7 = arith.constant dense<0.000000e+00> : vector<32xf32>
    %19 = vector.multi_reduction <add>, %18, %cst_7 [1] : vector<32x8xf32> to vector<32xf32>
    %20 = vector.shape_cast %19 : vector<32xf32> to vector<32x1xf32>
    %21 = tpu.concatenate %15, %20 in 1 : vector<32x1xf32>, vector<32x1xf32> -> vector<32x2xf32>
    %cst_8 = arith.constant dense<0xFF800000> : vector<32xf32>
    %22 = vector.multi_reduction <maximumf>, %21, %cst_8 [1] : vector<32x2xf32> to vector<32xf32>
    %23 = vector.shape_cast %22 : vector<32xf32> to vector<32x1xf32>
    %24 = vector.broadcast %23 : vector<32x1xf32> to vector<32x2xf32>
    %25 = arith.subf %21, %24 : vector<32x2xf32>
    %26 = math.exp %25 : vector<32x2xf32>
    %cst_9 = arith.constant dense<0.000000e+00> : vector<32xf32>
    %27 = vector.multi_reduction <add>, %26, %cst_9 [1] : vector<32x2xf32> to vector<32xf32>
    %28 = vector.shape_cast %27 : vector<32xf32> to vector<32x1xf32>
    %29 = tpu.reciprocal %28 {approx = true} : vector<32x1xf32> -> vector<32x1xf32>
    %30 = vector.broadcast %29 : vector<32x1xf32> to vector<32x2xf32>
    %31 = arith.mulf %26, %30 : vector<32x2xf32>
    %32 = vector.extract_strided_slice %31 {offsets = [0, 0], sizes = [16, 2], strides = [1, 1]} : vector<32x2xf32> to vector<16x2xf32>
    %33 = vector.extract_strided_slice %31 {offsets = [16, 0], sizes = [16, 2], strides = [1, 1]} : vector<32x2xf32> to vector<16x2xf32>
    %34 = arith.addf %32, %33 : vector<16x2xf32>
    %cst_10 = arith.constant 9.99999971E-10 : f32
    %35 = vector.broadcast %cst_10 : f32 to vector<16x2xf32>
    %36 = arith.addf %34, %35 : vector<16x2xf32>
    %37 = tpu.reciprocal %36 {approx = true} : vector<16x2xf32> -> vector<16x2xf32>
    %38 = tpu.concatenate %37, %37 in 0 : vector<16x2xf32>, vector<16x2xf32> -> vector<32x2xf32>
    %39 = arith.mulf %31, %38 : vector<32x2xf32>
    %cst_11 = arith.constant 0.000000e+00 : f32
    %40 = vector.broadcast %cst_11 : f32 to vector<32x32xf32>
    %41 = vector.extract_strided_slice %10 {offsets = [0, 0], sizes = [16, 32], strides = [1, 1]} : vector<32x32xf32> to vector<16x32xf32>
    %42 = tpu.concatenate %41, %41 in 0 : vector<16x32xf32>, vector<16x32xf32> -> vector<32x32xf32>
    %43 = vector.extract_strided_slice %39 {offsets = [0, 0], sizes = [32, 1], strides = [1, 1]} : vector<32x2xf32> to vector<32x1xf32>
    %44 = vector.broadcast %43 : vector<32x1xf32> to vector<32x32xf32>
    %45 = arith.mulf %44, %42 : vector<32x32xf32>
    %46 = arith.addf %40, %45 : vector<32x32xf32>
    %47 = vector.extract_strided_slice %10 {offsets = [16, 0], sizes = [16, 32], strides = [1, 1]} : vector<32x32xf32> to vector<16x32xf32>
    %48 = tpu.concatenate %47, %47 in 0 : vector<16x32xf32>, vector<16x32xf32> -> vector<32x32xf32>
    %49 = vector.extract_strided_slice %39 {offsets = [0, 1], sizes = [32, 1], strides = [1, 1]} : vector<32x2xf32> to vector<32x1xf32>
    %50 = vector.broadcast %49 : vector<32x1xf32> to vector<32x32xf32>
    %51 = arith.mulf %50, %48 : vector<32x32xf32>
    %52 = arith.addf %46, %51 : vector<32x32xf32>
    %53 = arith.subf %8, %52 : vector<32x32xf32>
    %cst_12 = arith.constant dense<0.000000e+00> : vector<32xf32>
    %54 = vector.multi_reduction <add>, %53, %cst_12 [0] : vector<32x32xf32> to vector<32xf32>
    %55 = vector.shape_cast %54 : vector<32xf32> to vector<1x32xf32>
    %cst_13 = arith.constant 3.125000e-02 : f32
    %56 = vector.broadcast %cst_13 : f32 to vector<1x32xf32>
    %57 = arith.mulf %55, %56 : vector<1x32xf32>
    %58 = vector.broadcast %57 : vector<1x32xf32> to vector<32x32xf32>
    %59 = arith.subf %53, %58 : vector<32x32xf32>
    %60 = arith.mulf %59, %59 : vector<32x32xf32>
    %cst_14 = arith.constant dense<0.000000e+00> : vector<32xf32>
    %61 = vector.multi_reduction <add>, %60, %cst_14 [0] : vector<32x32xf32> to vector<32xf32>
    %62 = vector.shape_cast %61 : vector<32xf32> to vector<1x32xf32>
    %cst_15 = arith.constant 3.125000e-02 : f32
    %63 = vector.broadcast %cst_15 : f32 to vector<1x32xf32>
    %64 = arith.mulf %62, %63 : vector<1x32xf32>
    %cst_16 = arith.constant 9.99999974E-6 : f32
    %65 = vector.broadcast %cst_16 : f32 to vector<1x32xf32>
    %66 = arith.addf %64, %65 : vector<1x32xf32>
    %67 = math.rsqrt %66 : vector<1x32xf32>
    %68 = vector.broadcast %67 : vector<1x32xf32> to vector<32x32xf32>
    %69 = arith.mulf %59, %68 : vector<32x32xf32>
    %c0_17 = arith.constant 0 : index
    %c0_18 = arith.constant 0 : index
    %70 = vector.load %arg4[%c0_17, %c0_18] : memref<1x32xf32, #tpu.memory_space<vmem>>, vector<1x32xf32>
    %71 = vector.broadcast %70 : vector<1x32xf32> to vector<32x32xf32>
    %72 = arith.mulf %69, %71 : vector<32x32xf32>
    %c0_19 = arith.constant 0 : index
    %c0_20 = arith.constant 0 : index
    %73 = vector.load %arg5[%c0_19, %c0_20] : memref<1x32xf32, #tpu.memory_space<vmem>>, vector<1x32xf32>
    %74 = vector.broadcast %73 : vector<1x32xf32> to vector<32x32xf32>
    %75 = arith.addf %72, %74 : vector<32x32xf32>
    %cst_21 = arith.constant 0.000000e+00 : f32
    %76 = vector.broadcast %cst_21 : f32 to vector<32x32xf32>
    %77 = arith.maximumf %75, %76 : vector<32x32xf32>
    %78 = arith.addf %7, %77 : vector<32x32xf32>
    %c0_22 = arith.constant 0 : index
    %c0_23 = arith.constant 0 : index
    %79 = vector.load %arg6[%c0_22, %c0_23] : memref<2x32xf32, #tpu.memory_space<vmem>>, vector<2x32xf32>
    %cst_24 = arith.constant dense<0.000000e+00> : vector<2x32xf32>
    %80 = tpu.matmul %79, %78, %cst_24 {dimension_numbers = #tpu.dot_dimension_numbers<[1], [0], [0], [1], [0, 0, 1, 1], [], []>} : vector<2x32xf32>, vector<32x32xf32>, vector<2x32xf32> -> vector<2x32xf32>
    %c0_25 = arith.constant 0 : index
    %c0_26 = arith.constant 0 : index
    %c0_27 = arith.constant 0 : index
    %81 = vector.load %arg7[%c0_25, %c0_26, %c0_27] : memref<1x2x32xf32, #tpu.memory_space<vmem>>, vector<1x2x32xf32>
    %82 = vector.shape_cast %81 : vector<1x2x32xf32> to vector<2x32xf32>
    %83 = vector.shape_cast %80 : vector<2x32xf32> to vector<1x2x32xf32>
    tpu.vector_store %arg7[%c0_25, %c0_26, %c0_27], %83 {strides = array<i32>} : memref<1x2x32xf32, #tpu.memory_space<vmem>>, vector<1x2x32xf32>,
    return
  }
  func.func @transform_0(%arg0: i32) -> (i32, i32, i32) {
    %c0_i32 = arith.constant 0 : i32
    %c0_i32_0 = arith.constant 0 : i32
    %c0_i32_1 = arith.constant 0 : i32
    return %arg0, %c0_i32, %c0_i32_0 : i32, i32, i32
  }
  func.func @transform_1(%arg0: i32) -> (i32, i32) {
    %c0_i32 = arith.constant 0 : i32
    %c0_i32_0 = arith.constant 0 : i32
    %c0_i32_1 = arith.constant 0 : i32
    return %c0_i32, %c0_i32_0 : i32, i32
  }
  func.func @transform_2(%arg0: i32) -> (i32, i32) {
    %c0_i32 = arith.constant 0 : i32
    %c0_i32_0 = arith.constant 0 : i32
    %c0_i32_1 = arith.constant 0 : i32
    return %c0_i32, %c0_i32_0 : i32, i32
  }
  func.func @transform_3(%arg0: i32) -> (i32, i32) {
    %c0_i32 = arith.constant 0 : i32
    %c0_i32_0 = arith.constant 0 : i32
    %c0_i32_1 = arith.constant 0 : i32
    return %c0_i32, %c0_i32_0 : i32, i32
  }
  func.func @transform_4(%arg0: i32) -> (i32, i32) {
    %c0_i32 = arith.constant 0 : i32
    %c0_i32_0 = arith.constant 0 : i32
    %c0_i32_1 = arith.constant 0 : i32
    return %c0_i32, %c0_i32_0 : i32, i32
  }
  func.func @transform_5(%arg0: i32) -> (i32, i32) {
    %c0_i32 = arith.constant 0 : i32
    %c0_i32_0 = arith.constant 0 : i32
    %c0_i32_1 = arith.constant 0 : i32
    return %c0_i32, %c0_i32_0 : i32, i32
  }
  func.func @transform_6(%arg0: i32) -> (i32, i32, i32) {
    %c0_i32 = arith.constant 0 : i32
    %c0_i32_0 = arith.constant 0 : i32
    %c0_i32_1 = arith.constant 0 : i32
    return %arg0, %c0_i32, %c0_i32_0 : i32, i32, i32
  }
}

</mosaic_0001>

<llo_original>
// kernel: tpu_custom_call.1
$region0: #{tpu_custom_call.1}
  #allocation0 [shape = 'u32[]', space=smem, size = 0x4, offset = 0x4, fixed_abs, tag = 'smem constant byte address 0x4 - core index']
  #allocation1 [shape = 'u32[144,128]{1,0:T(1,128)}', space=vmem, size = 0x12000, scoped, tag = 'internal scratch']
  %s0 = inlined_call_operand.vmem [shape: f32[1,32,11], index: 0, kind: input, shape index: {}]
  %s1 = inlined_call_operand.vmem [shape: f32[11,104], index: 1, kind: input, shape index: {}]
  %s2 = inlined_call_operand.vmem [shape: f32[1,104], index: 2, kind: input, shape index: {}]
  %s3 = inlined_call_operand.vmem [shape: f32[1,32], index: 3, kind: input, shape index: {}]
  %s4 = inlined_call_operand.vmem [shape: f32[1,32], index: 4, kind: input, shape index: {}]
  %s5 = inlined_call_operand.vmem [shape: f32[2,32], index: 5, kind: input, shape index: {}]
  %s6 = inlined_call_operand.hbm [shape: f32[1,2,32], index: 6, kind: output, shape index: {}]
  %s7 = sld [smem:[#allocation0]]
  $region34: #{tpu_custom_call.1} parent=0
    _
  %s9 = ssub.s32 1, %s7
  %s10 = scalar_select 0, %s9, %s7
  $region1: #{tpu_custom_call.1} parent=0
    #allocation2 [shape = 'u8[1024]{0}', space=vmem, size = 0x400, scoped, tag = 'output window, operand 0, single buffered']
    #allocation3 [shape = 's32[1]{0}', space=sflag, size = 0x4, scoped, tag = 'scoped memory for tpu_custom_call.1']
    %11 = vsyncpa [#allocation3], 0
    // Predicated region
    $region2: #{tpu_custom_call.1} parent=1 // pred_check
      _
    $region3: #{tpu_custom_call.1} parent=1 // pred_check_branch
      %13 = sbr.rel (0) target = $region5
    $region4: #{tpu_custom_call.1} parent=1 // pred_region
      _
    $region5: #{tpu_custom_call.1} parent=1 // pred_fallthru
      _
    // Predicated region
    $region6: #{tpu_custom_call.1} parent=1 // pred_check
      _
    $region7: #{tpu_custom_call.1} parent=1 // pred_check_branch
      %15 = sbr.rel (0) target = $region9
    $region8: #{tpu_custom_call.1} parent=1 // pred_region
      _
    $region9: #{tpu_custom_call.1} parent=1 // pred_fallthru
      _
    // Predicated region
    $region10: #{tpu_custom_call.1} parent=1 // pred_check
      _
    $region11: #{tpu_custom_call.1} parent=1 // pred_check_branch
      %17 = sbr.rel (0) target = $region13
    $region12: #{tpu_custom_call.1} parent=1 // pred_region
      _
    $region13: #{tpu_custom_call.1} parent=1 // pred_fallthru
      _
    // Predicated region
    $region14: #{tpu_custom_call.1} parent=1 // pred_check
      _
    $region15: #{tpu_custom_call.1} parent=1 // pred_check_branch
      %19 = sbr.rel (0) target = $region17
    $region16: #{tpu_custom_call.1} parent=1 // pred_region
      _
    $region17: #{tpu_custom_call.1} parent=1 // pred_fallthru
      _
    // Predicated region
    $region18: #{tpu_custom_call.1} parent=1 // pred_check
      _
    $region19: #{tpu_custom_call.1} parent=1 // pred_check_branch
      %21 = sbr.rel (0) target = $region21
    $region20: #{tpu_custom_call.1} parent=1 // pred_region
      _
    $region21: #{tpu_custom_call.1} parent=1 // pred_fallthru
      _
    // Predicated region
    $region22: #{tpu_custom_call.1} parent=1 // pred_check
      _
    $region23: #{tpu_custom_call.1} parent=1 // pred_check_branch
      %23 = sbr.rel (0) target = $region25
    $region24: #{tpu_custom_call.1} parent=1 // pred_region
      _
    $region25: #{tpu_custom_call.1} parent=1 // pred_fallthru
      _
    %v24 = vld [vmem:[%s0] sm:$0xff]
    %v25 = vld [vmem:[%s0 + $0x8] sm:$0xff]
    %v26 = vld [vmem:[%s0 + $0x10] sm:$0xff]
    %v27 = vld [vmem:[%s0 + $0x18] sm:$0xff]
    %v28 = vld [vmem:[%s1] sm:$0xff]
    %v29 = vld [vmem:[%s1 + $0x8] sm:$0x7]
    %v30 = vld [vmem:[%s2] sm:$0x1]
    %v32 = vlaneseq
    %v33 = vshrl.u32 %v32, 7
    %v34 = vsub.s32 0, %v33
    %v35 = vrot.slane %v30, %v34
    %vm37 = vcmask 89088
    %v39 = vsel %vm37, %v24, 0
    %v42 = vsel %vm37, %v25, 0
    %v45 = vsel %vm37, %v26, 0
    %v48 = vsel %vm37, %v27, 0
    %vm50 = vcmask 1042432
    %v52 = vsel %vm50, %v29, 0
    %54 = vmatprep.subr.mxu0 0.0
    %55 = vmatpush1.msra.mxu0 %v28
    %56 = vmatprep.subr.mxu0 0.0
    %57 = vmatpush1.msra.mxu0 %v52
    %58 = vmatprep.subr.mxu0 0.0
    %59 = vmatpush1.msra.mxu0 0.0
    %60 = vmatprep.subr.mxu0 0.0
    %61 = vmatpush1.msra.mxu0 0.0
    %62 = vmatprep.subr.mxu0 0.0
    %63 = vmatpush1.msra.mxu0 0.0
    %64 = vmatprep.subr.mxu0 0.0
    %65 = vmatpush1.msra.mxu0 0.0
    %66 = vmatprep.subr.mxu0 0.0
    %67 = vmatpush1.msra.mxu0 0.0
    %68 = vmatprep.subr.mxu0 0.0
    %69 = vmatpush1.msra.mxu0 0.0
    %70 = vmatprep.subr.mxu0 0.0
    %71 = vmatpush1.msra.mxu0 0.0
    %72 = vmatprep.subr.mxu0 0.0
    %73 = vmatpush1.msra.mxu0 0.0
    %74 = vmatprep.subr.mxu0 0.0
    %75 = vmatpush1.msra.mxu0 0.0
    %76 = vmatprep.subr.mxu0 0.0
    %77 = vmatpush1.msra.mxu0 0.0
    %78 = vmatprep.subr.mxu0 0.0
    %79 = vmatpush1.msra.mxu0 0.0
    %80 = vmatprep.subr.mxu0 0.0
    %81 = vmatpush1.msra.mxu0 0.0
    %82 = vmatprep.subr.mxu0 0.0
    %83 = vmatpush1.msra.mxu0 0.0
    %84 = vmatprep.subr.mxu0 0.0
    %85 = vmatpush1.msra.mxu0 0.0
    %86 = vmatprep.subr.mxu0 0.0
    %87 = vmatpush1.msra.mxu0 0.0
    %88 = vmatprep.subr.mxu0 0.0
    %89 = vmatpush1.msra.mxu0 0.0
    %90 = vmatprep.subr.mxu0 0.0
    %91 = vmatpush1.msra.mxu0 0.0
    %92 = vmatprep.subr.mxu0 0.0
    %93 = vmatpush1.msra.mxu0 0.0
    %94 = vmatprep.subr.mxu0 0.0
    %95 = vmatpush1.msra.mxu0 0.0
    %96 = vmatprep.subr.mxu0 0.0
    %97 = vmatpush1.msra.mxu0 0.0
    %98 = vmatprep.subr.mxu0 0.0
    %99 = vmatpush1.msra.mxu0 0.0
    %100 = vmatprep.subr.mxu0 0.0
    %101 = vmatpush1.msra.mxu0 0.0
    %102 = vmatprep.subr.mxu0 0.0
    %103 = vmatpush1.msra.mxu0 0.0
    %104 = vmatprep.subr.mxu0 0.0
    %105 = vmatpush1.msra.mxu0 0.0
    %106 = vmatprep.subr.mxu0 0.0
    %107 = vmatpush1.msra.mxu0 0.0
    %108 = vmatprep.subr.mxu0 0.0
    %109 = vmatpush1.msra.mxu0 0.0
    %110 = vmatprep.subr.mxu0 0.0
    %111 = vmatpush1.msra.mxu0 0.0
    %112 = vmatprep.subr.mxu0 0.0
    %113 = vmatpush1.msra.mxu0 0.0
    %114 = vmatprep.subr.mxu0 0.0
    %115 = vmatpush1.msra.mxu0 0.0
    %116 = vmatprep.subr.mxu0 0.0
    %117 = vmatpush1.msra.mxu0 0.0
    %118 = vmatprep.mubr.f32.mxu0 0.0
    %119 = vmatmul.mubr.f32.gmra.mrb[0].mxu0 %v39
    %v120 = vpop.f32.mrb[0].mxu0
    %v121 = vadd.f32 %v35, %v120
    %v122 = vpop.f32.mrb[0].mxu0
    %123 = vmatprep.mubr.f32.mxu0 0.0
    %124 = vmatmul.mubr.f32.gmra.mrb[0].mxu0 %v42
    %v125 = vpop.f32.mrb[0].mxu0
    %v126 = vadd.f32 %v35, %v125
    %v127 = vpop.f32.mrb[0].mxu0
    %128 = vmatprep.mubr.f32.mxu0 0.0
    %129 = vmatmul.mubr.f32.gmra.mrb[0].mxu0 %v45
    %v130 = vpop.f32.mrb[0].mxu0
    %v131 = vadd.f32 %v35, %v130
    %v132 = vpop.f32.mrb[0].mxu0
    %133 = vmatprep.mubr.f32.mxu0 0.0
    %134 = vmatmul.mubr.f32.gmra.mrb[0].mxu0 %v48
    %v135 = vpop.f32.mrb[0].mxu0
    %v136 = vadd.f32 %v35, %v135
    %v137 = vpop.f32.mrb[0].mxu0
    %138 = vdwg.mxu0
    %v139 = vmul.f32 %v121, %v121
    %v140 = vmul.f32 %v126, %v126
    %v141 = vmul.f32 %v131, %v121
    %v142 = vmul.f32 %v136, %v126
    %147 = vrot.lane.b32.xlu0 %v139, 64
    %v148 = vpop.permute.xlu0 %147
    %149 = vrot.lane.b32.xlu0 %v140, 64
    %v150 = vpop.permute.xlu0 %149
    %151 = vrot.lane.b32.xlu0 %v141, 64
    %v152 = vpop.permute.xlu0 %151
    %153 = vrot.lane.b32.xlu0 %v142, 64
    %v154 = vpop.permute.xlu0 %153
    %vm159 = vcmask 64512
    %v160 = vsel %vm159, %v148, 0.0
    %161 = vadd.xlane.f32.xlu0 %v160
    %v162 = vpop.xlane.xlu0 %161
    %v163 = vsel %vm159, %v150, 0.0
    %164 = vadd.xlane.f32.xlu0 %v163
    %v165 = vpop.xlane.xlu0 %164
    %v166 = vsel %vm159, %v152, 0.0
    %167 = vadd.xlane.f32.xlu0 %v166
    %v168 = vpop.xlane.xlu0 %167
    %v169 = vsel %vm159, %v154, 0.0
    %170 = vadd.xlane.f32.xlu0 %v169
    %v171 = vpop.xlane.xlu0 %170
    %v172 = vmul.f32 %v131, %v131
    %v173 = vmul.f32 %v136, %v136
    %176 = vrot.lane.b32.xlu0 %v172, 64
    %v177 = vpop.permute.xlu0 %176
    %178 = vrot.lane.b32.xlu0 %v173, 64
    %v179 = vpop.permute.xlu0 %178
    %v182 = vsel %vm159, %v177, 0.0
    %183 = vadd.xlane.f32.xlu0 %v182
    %v184 = vpop.xlane.xlu0 %183
    %v185 = vsel %vm159, %v179, 0.0
    %186 = vadd.xlane.f32.xlu0 %v185
    %v187 = vpop.xlane.xlu0 %186
    %vm188 = vcmask 7168
    %v189 = vsel %vm188, %v162, %v168
    %v190 = vsel %vm188, %v165, %v171
    %v191 = vsel %vm188, %v168, %v184
    %v192 = vsel %vm188, %v171, %v187
    %vm193 = vcmask 15360
    %v194 = vsel %vm193, %v189, -inf
    %195 = vmax.xlane.f32.xlu0 %v194
    %v196 = vpop.xlane.xlu0 %195
    %v197 = vsel %vm193, %v190, -inf
    %198 = vmax.xlane.f32.xlu0 %v197
    %v199 = vpop.xlane.xlu0 %198
    %v200 = vsel %vm193, %v191, -inf
    %201 = vmax.xlane.f32.xlu0 %v200
    %v202 = vpop.xlane.xlu0 %201
    %v203 = vsel %vm193, %v192, -inf
    %204 = vmax.xlane.f32.xlu0 %v203
    %v205 = vpop.xlane.xlu0 %204
    %v206 = vsub.f32 %v189, %v196
    %v207 = vsub.f32 %v190, %v199
    %v208 = vsub.f32 %v191, %v202
    %v209 = vsub.f32 %v192, %v205
    %v210 = vmul.f32 %v206, 1.442695
    %v211 = vpow.pop %v210
    %v212 = vmul.f32 %v207, 1.442695
    %v213 = vpow.pop %v212
    %v214 = vmul.f32 %v208, 1.442695
    %v215 = vpow.pop %v214
    %v216 = vmul.f32 %v209, 1.442695
    %v217 = vpow.pop %v216
    %v218 = vsel %vm193, %v211, 0.0
    %219 = vadd.xlane.f32.xlu0 %v218
    %v220 = vpop.xlane.xlu0 %219
    %v221 = vsel %vm193, %v213, 0.0
    %222 = vadd.xlane.f32.xlu0 %v221
    %v223 = vpop.xlane.xlu0 %222
    %v224 = vsel %vm193, %v215, 0.0
    %225 = vadd.xlane.f32.xlu0 %v224
    %v226 = vpop.xlane.xlu0 %225
    %v227 = vsel %vm193, %v217, 0.0
    %228 = vadd.xlane.f32.xlu0 %v227
    %v229 = vpop.xlane.xlu0 %228
    %v230 = vrcp.pop %v220
    %v231 = vrcp.pop %v223
    %v232 = vrcp.pop %v226
    %v233 = vrcp.pop %v229
    %v234 = vmul.f32 %v211, %v230
    %v235 = vmul.f32 %v213, %v231
    %v236 = vmul.f32 %v215, %v232
    %v237 = vmul.f32 %v217, %v233
    %v238 = vadd.f32 %v234, %v236
    %v239 = vadd.f32 %v235, %v237
    %v240 = vadd.f32 %v238, 1e-09
    %v241 = vadd.f32 %v239, 1e-09
    %v242 = vrcp.pop %v240
    %v243 = vrcp.pop %v241
    %v244 = vmul.f32 %v234, %v242
    %v245 = vmul.f32 %v235, %v243
    %v246 = vmul.f32 %v236, %v242
    %v247 = vmul.f32 %v237, %v243
    %249 = vset.pattern.permute.xlu0 0
    %250 = vperm.xlu0 %249, %v244
    %v251 = vpop.permute.xlu0 %250
    %254 = vset.pattern.permute.xlu0 0
    %255 = vperm.xlu0 %254, %v245
    %v256 = vpop.permute.xlu0 %255
    %259 = vset.pattern.permute.xlu0 0
    %260 = vperm.xlu0 %259, %v246
    %v261 = vpop.permute.xlu0 %260
    %264 = vset.pattern.permute.xlu0 0
    %265 = vperm.xlu0 %264, %v247
    %v266 = vpop.permute.xlu0 %265
    %v268 = vmul.f32 %v251, %v121
    %v269 = vmul.f32 %v256, %v126
    %v270 = vmul.f32 %v261, %v121
    %v271 = vmul.f32 %v266, %v126
    %v272 = vadd.f32 %v268, 0.0
    %v273 = vadd.f32 %v269, 0.0
    %v274 = vadd.f32 %v270, 0.0
    %v275 = vadd.f32 %v271, 0.0
    %276 = vset.pattern.permute.xlu0 1
    %277 = vperm.xlu0 %276, %v244
    %v278 = vpop.permute.xlu0 %277
    %280 = vset.pattern.permute.xlu0 1
    %281 = vperm.xlu0 %280, %v245
    %v282 = vpop.permute.xlu0 %281
    %284 = vset.pattern.permute.xlu0 1
    %285 = vperm.xlu0 %284, %v246
    %v286 = vpop.permute.xlu0 %285
    %288 = vset.pattern.permute.xlu0 1
    %289 = vperm.xlu0 %288, %v247
    %v290 = vpop.permute.xlu0 %289
    %v292 = vmul.f32 %v278, %v131
    %v293 = vmul.f32 %v282, %v136
    %v294 = vmul.f32 %v286, %v131
    %v295 = vmul.f32 %v290, %v136
    %v296 = vadd.f32 %v272, %v292
    %v297 = vadd.f32 %v273, %v293
    %v298 = vadd.f32 %v274, %v294
    %v299 = vadd.f32 %v275, %v295
    %304 = vrot.lane.b32.xlu0 %v296, 88
    %v305 = vpop.permute.xlu0 %304
    %306 = vrot.lane.b32.xlu0 %v297, 88
    %v307 = vpop.permute.xlu0 %306
    %308 = vrot.lane.b32.xlu0 %v298, 88
    %v309 = vpop.permute.xlu0 %308
    %310 = vrot.lane.b32.xlu0 %v299, 88
    %v311 = vpop.permute.xlu0 %310
    %v316 = vsub.f32 %v121, %v305
    %v317 = vsub.f32 %v126, %v307
    %v318 = vsub.f32 %v131, %v309
    %v319 = vsub.f32 %v136, %v311
    %vm320 = vcmask 523520
    %v321 = vsel %vm320, %v316, 0.0
    %v322 = vsel %vm320, %v317, 0.0
    %v323 = vadd.f32 %v321, %v322
    %v324 = vsel %vm320, %v318, 0.0
    %v325 = vadd.f32 %v323, %v324
    %v326 = vsel %vm320, %v319, 0.0
    %v327 = vadd.f32 %v325, %v326
    %v328 = vrot.slane %v327, 4
    %v329 = vadd.f32 %v327, %v328
    %v330 = vrot.slane %v329, 2
    %v331 = vadd.f32 %v329, %v330
    %v332 = vrot.slane %v331, 1
    %v333 = vadd.f32 %v331, %v332
    %v334 = vmul.f32 %v333, 0.03125
    %v335 = vsub.f32 %v316, %v334
    %v336 = vsub.f32 %v317, %v334
    %v337 = vsub.f32 %v318, %v334
    %v338 = vsub.f32 %v319, %v334
    %v339 = vmul.f32 %v335, %v335
    %v340 = vmul.f32 %v336, %v336
    %v341 = vmul.f32 %v337, %v337
    %v342 = vmul.f32 %v338, %v338
    %v343 = vsel %vm320, %v339, 0.0
    %v344 = vsel %vm320, %v340, 0.0
    %v345 = vadd.f32 %v343, %v344
    %v346 = vsel %vm320, %v341, 0.0
    %v347 = vadd.f32 %v345, %v346
    %v348 = vsel %vm320, %v342, 0.0
    %v349 = vadd.f32 %v347, %v348
    %v350 = vrot.slane %v349, 4
    %v351 = vadd.f32 %v349, %v350
    %v352 = vrot.slane %v351, 2
    %v353 = vadd.f32 %v351, %v352
    %v354 = vrot.slane %v353, 1
    %v355 = vadd.f32 %v353, %v354
    %v356 = vmul.f32 %v355, 0.03125
    %v357 = vadd.f32 %v356, 1e-05
    %v358 = vrsqrt.pop %v357
    %v359 = vmul.f32 %v335, %v358
    %v360 = vmul.f32 %v336, %v358
    %v361 = vmul.f32 %v337, %v358
    %v362 = vmul.f32 %v338, %v358
    %v363 = vld [vmem:[%s3] sm:$0x1]
    %v365 = vlaneseq
    %v366 = vshrl.u32 %v365, 7
    %v367 = vsub.s32 0, %v366
    %v368 = vrot.slane %v363, %v367
    %369 = vrot.lane.b32.xlu0 %v368, 32
    %v370 = vpop.permute.xlu0 %369
    %v372 = vmul.f32 %v359, %v370
    %v373 = vmul.f32 %v360, %v370
    %v374 = vmul.f32 %v361, %v370
    %v375 = vmul.f32 %v362, %v370
    %v376 = vld [vmem:[%s4] sm:$0x1]
    %v378 = vlaneseq
    %v379 = vshrl.u32 %v378, 7
    %v380 = vsub.s32 0, %v379
    %v381 = vrot.slane %v376, %v380
    %382 = vrot.lane.b32.xlu0 %v381, 32
    %v383 = vpop.permute.xlu0 %382
    %v385 = vadd.f32 %v372, %v383
    %v386 = vadd.f32 %v373, %v383
    %v387 = vadd.f32 %v374, %v383
    %v388 = vadd.f32 %v375, %v383
    %v389 = vmax.f32 %v385, 0.0
    %v390 = vmax.f32 %v386, 0.0
    %v391 = vmax.f32 %v387, 0.0
    %v392 = vmax.f32 %v388, 0.0
    %397 = vrot.lane.b32.xlu0 %v389, 96
    %v398 = vpop.permute.xlu0 %397
    %399 = vrot.lane.b32.xlu0 %v390, 96
    %v400 = vpop.permute.xlu0 %399
    %401 = vrot.lane.b32.xlu0 %v391, 96
    %v402 = vpop.permute.xlu0 %401
    %403 = vrot.lane.b32.xlu0 %v392, 96
    %v404 = vpop.permute.xlu0 %403
    %v409 = vadd.f32 %v121, %v398
    %v410 = vadd.f32 %v126, %v400
    %v411 = vadd.f32 %v131, %v402
    %v412 = vadd.f32 %v136, %v404
    %v413 = vld [vmem:[%s5] sm:$0x3]
    %vm414 = vcmask 261120
    %v416 = vsel %vm414, %v413, 0
    %418 = vmatprep.subr.mxu0 0.0
    %419 = vmatpush1.msra.mxu0 %v409
    %420 = vmatprep.subr.mxu0 0.0
    %421 = vmatpush1.msra.mxu0 %v410
    %422 = vmatprep.subr.mxu0 0.0
    %423 = vmatpush1.msra.mxu0 %v411
    %424 = vmatprep.subr.mxu0 0.0
    %425 = vmatpush1.msra.mxu0 %v412
    %426 = vmatprep.subr.mxu0 0.0
    %427 = vmatpush1.msra.mxu0 0.0
    %428 = vmatprep.subr.mxu0 0.0
    %429 = vmatpush1.msra.mxu0 0.0
    %430 = vmatprep.subr.mxu0 0.0
    %431 = vmatpush1.msra.mxu0 0.0
    %432 = vmatprep.subr.mxu0 0.0
    %433 = vmatpush1.msra.mxu0 0.0
    %434 = vmatprep.subr.mxu0 0.0
    %435 = vmatpush1.msra.mxu0 0.0
    %436 = vmatprep.subr.mxu0 0.0
    %437 = vmatpush1.msra.mxu0 0.0
    %438 = vmatprep.subr.mxu0 0.0
    %439 = vmatpush1.msra.mxu0 0.0
    %440 = vmatprep.subr.mxu0 0.0
    %441 = vmatpush1.msra.mxu0 0.0
    %442 = vmatprep.subr.mxu0 0.0
    %443 = vmatpush1.msra.mxu0 0.0
    %444 = vmatprep.subr.mxu0 0.0
    %445 = vmatpush1.msra.mxu0 0.0
    %446 = vmatprep.subr.mxu0 0.0
    %447 = vmatpush1.msra.mxu0 0.0
    %448 = vmatprep.subr.mxu0 0.0
    %449 = vmatpush1.msra.mxu0 0.0
    %450 = vmatprep.subr.mxu0 0.0
    %451 = vmatpush1.msra.mxu0 0.0
    %452 = vmatprep.subr.mxu0 0.0
    %453 = vmatpush1.msra.mxu0 0.0
    %454 = vmatprep.subr.mxu0 0.0
    %455 = vmatpush1.msra.mxu0 0.0
    %456 = vmatprep.subr.mxu0 0.0
    %457 = vmatpush1.msra.mxu0 0.0
    %458 = vmatprep.subr.mxu0 0.0
    %459 = vmatpush1.msra.mxu0 0.0
    %460 = vmatprep.subr.mxu0 0.0
    %461 = vmatpush1.msra.mxu0 0.0
    %462 = vmatprep.subr.mxu0 0.0
    %463 = vmatpush1.msra.mxu0 0.0
    %464 = vmatprep.subr.mxu0 0.0
    %465 = vmatpush1.msra.mxu0 0.0
    %466 = vmatprep.subr.mxu0 0.0
    %467 = vmatpush1.msra.mxu0 0.0
    %468 = vmatprep.subr.mxu0 0.0
    %469 = vmatpush1.msra.mxu0 0.0
    %470 = vmatprep.subr.mxu0 0.0
    %471 = vmatpush1.msra.mxu0 0.0
    %472 = vmatprep.subr.mxu0 0.0
    %473 = vmatpush1.msra.mxu0 0.0
    %474 = vmatprep.subr.mxu0 0.0
    %475 = vmatpush1.msra.mxu0 0.0
    %476 = vmatprep.subr.mxu0 0.0
    %477 = vmatpush1.msra.mxu0 0.0
    %478 = vmatprep.subr.mxu0 0.0
    %479 = vmatpush1.msra.mxu0 0.0
    %480 = vmatprep.subr.mxu0 0.0
    %481 = vmatpush1.msra.mxu0 0.0
    %482 = vmatprep.mubr.f32.mxu0 0.0
    %483 = vmatmul.mubr.f32.gmra.mrb[0].mxu0 %v416
    %v484 = vpop.f32.mrb[0].mxu0
    %v485 = vadd.f32 0.0, %v484
    %v486 = vpop.f32.mrb[0].mxu0
    %487 = vdwg.mxu0
    %vm488 = vcmask 254976
    %489 = vst.msk [vmem:[#allocation2] sm:$0x3] %vm488, %v485
    // Predicated region
    $region26: #{tpu_custom_call.1} parent=1 // pred_check
      _
    $region27: #{tpu_custom_call.1} parent=1 // pred_check_branch
      %491 = sbr.rel (0) target = $region29
    $region28: #{tpu_custom_call.1} parent=1 // pred_region
      %s493 = ssub.s32 32, 32
      %494 = vsyncadd [#allocation3], %s493
      %s496 = sshll.u32 [#allocation2], 4
      %s497 = int_to_ptr.vmem [resolvable:$true] %s496
      %499 = dma.vmem_to_hbm [thread:$0]  %s497, 32, %s6, [#allocation3]
    $region29: #{tpu_custom_call.1} parent=1 // pred_fallthru
      _
    // Predicated region
    $region30: #{tpu_custom_call.1} parent=1 // pred_check
      _
    $region31: #{tpu_custom_call.1} parent=1 // pred_check_branch
      %501 = sbr.rel (0) target = $region33
    $region32: #{tpu_custom_call.1} parent=1 // pred_region
      %502 = dma.done [#allocation3], 32
    $region33: #{tpu_custom_call.1} parent=1 // pred_fallthru
      _
    %503 = vsyncpa [#allocation3], 1

</llo_original>
